<compile_context>
chip_gen: v7x
topology: tpu7x:2x2x1
jax: 0.10.0
libtpu: 0.0.40
codegen_flags: <defaults>
</compile_context>

<pallas_src>
import functools

import jax
import jax.numpy as jnp
from jax import lax
from jax.experimental import pallas as pl
from jax.experimental.pallas import tpu as pltpu


def _embedding_kernel(ids_ref, w_ref, out_ref, *, pack: int):
    """One grid step: gather rows*pack embeddings via a one-hot MXU matmul.

    ids_ref : VMEM (rows, pack) int32 -- ids already offset by p*V, i.e. they
              are global row indices into the block-diagonal table.
    w_ref   : VMEM (pack*V, pack*D_pad) block-diagonal embedding table.
    out_ref : VMEM (rows, pack*D_pad) lane-dense output block.
    """
    rows = out_ref.shape[0]
    pv = w_ref.shape[0]                                   # pack * V

    ids = ids_ref[...]                                    # (rows, pack) int32
    col = lax.broadcasted_iota(jnp.int32, (rows, pv), 1)  # column ids 0..pv-1

    # Column ranges for different p are disjoint (ids are pre-offset by p*V),
    # so the per-p hits can be OR-ed as bools; cast to float exactly once.
    # (Single compare via jnp.repeat(ids, V, axis=1) would need a minor-dim
    #  collapsing reshape/relayout; bool-OR is the compile-safe variant.)
    hit = col == ids[:, 0:1]
    for p in range(1, pack):
        hit = jnp.logical_or(hit, col == ids[:, p : p + 1])
    onehot = hit.astype(w_ref.dtype)                      # (rows, pv)

    out_ref[...] = jnp.dot(
        onehot, w_ref[...], preferred_element_type=jnp.float32
    ).astype(out_ref.dtype)


_DIVISORS_OF_128 = (1, 2, 4, 8, 16, 32, 64, 128)


def hier_spatial_embedding(
    x: jax.Array, weight: jax.Array, *, tokens_per_block: int = 8192
) -> jax.Array:
    """Pallas implementation of HIERSpatialEmbedding.forward.

    x      : (B, L) integer location ids.
    weight : (V, D) embedding table, D = sum(sizes).
    returns: (B, L, D) embeddings, same semantics as nn.Embedding(x).
    """
    B, L = x.shape
    V, D = weight.shape

    # ---- pad D so the packed output lane width is always a multiple of 128 --
    if D <= 128:
        d_pad = next(d for d in _DIVISORS_OF_128 if d >= D)
    else:
        d_pad = pl.cdiv(D, 128) * 128
    pack = max(1, 128 // d_pad)
    pd = pack * d_pad                                     # output lane width
    pv = pack * V

    w_use = weight if d_pad == D else jnp.pad(weight, ((0, 0), (0, d_pad - D)))

    # Block-diagonal table (pack copies of W on the diagonal) so one
    # (rows, pack*V) x (pack*V, pack*D) matmul yields lane-dense output rows.
    # NOTE: this depends only on the weights -- in a real training/inference
    # step it should be computed once and cached, not rebuilt per forward.
    w_blk = w_use if pack == 1 else jnp.kron(jnp.eye(pack, dtype=w_use.dtype), w_use)

    # ---- flatten tokens; pad only to a multiple of `pack` (<= pack-1 ids) ---
    n = B * L
    ids = x.reshape(-1).astype(jnp.int32)
    rows = pl.cdiv(n, pack)
    n_pack = rows * pack
    if n_pack != n:
        ids = jnp.pad(ids, (0, n_pack - n))               # pad id 0 (valid)
    # Pre-offset ids by p*V so they index directly into the block-diagonal
    # table; saves the per-p add inside the kernel.
    offsets = (jnp.arange(pack, dtype=jnp.int32) * V)[None, :]
    ids2 = ids.reshape(rows, pack) + offsets

    # ---- tile sizing under an explicit VMEM budget (v7x-safe) ---------------
    def vmem_estimate(r: int) -> int:
        return (
            2 * r * pd * 4          # double-buffered output blocks
            + 2 * r * 128 * 4       # ids blocks (lane-padded to 128 in VMEM)
            + 2 * pv * pd * 4       # block-diagonal table (double buffered)
            + 3 * r * pv * 4        # in-flight iota / one-hot intermediates
        )

    budget = 24 * 1024 * 1024       # leave headroom inside a 32 MiB scoped cap
    max_rows = max(8, (tokens_per_block // pack // 8) * 8)
    while max_rows > 8 and vmem_estimate(max_rows) > budget:
        max_rows = max(8, (max_rows // 2 // 8) * 8)
    # TODO(synk): for large vocabularies (V in the thousands) the block-diag
    # table / one-hot should be tiled over V with an accumulator grid axis.

    if rows <= max_rows:
        # Single exact block (block dims == array dims is always legal).
        rows_per_block = rows
        grid = (1,)
    else:
        # Large input: fixed 8-aligned blocks; a ragged final block is clipped
        # by Pallas, so the output HBM array stays exactly `rows` rows and no
        # post-kernel slice copy is needed.
        rows_per_block = max_rows
        grid = (pl.cdiv(rows, rows_per_block),)

    kernel = functools.partial(_embedding_kernel, pack=pack)

    out_packed = pl.pallas_call(
        kernel,
        out_shape=jax.ShapeDtypeStruct((rows, pd), w_use.dtype),
        grid_spec=pltpu.PrefetchScalarGridSpec(
            num_scalar_prefetch=0,
            grid=grid,
            in_specs=[
                pl.BlockSpec((rows_per_block, pack), lambda i: (i, 0)),
                pl.BlockSpec((pv, pd), lambda i: (0, 0)),
            ],
            out_specs=pl.BlockSpec((rows_per_block, pd), lambda i: (i, 0)),
        ),
        compiler_params=pltpu.CompilerParams(
            dimension_semantics=("parallel",),
            vmem_limit_bytes=32 * 1024 * 1024,
        ),
    )(ids2, w_blk)

    # Row-major contiguous reshape: (rows, pack*d_pad) -> (rows*pack, d_pad)
    # is free.  Slices below only fire for ragged configs (n % pack != 0 or
    # D not a divisor/multiple of 128); in the common case the output is exact.
    out_flat = out_packed.reshape(rows * pack, d_pad)
    if n_pack != n:
        out_flat = out_flat[:n]
    if d_pad != D:
        out_flat = out_flat[:, :D]
    return out_flat.reshape(B, L, D)


# TODO(synk): `hierarchical_avg` mutates the embedding table in-place using a
# pandas groupby over the hierarchy grid; it is not part of forward() and has
# no clean Pallas equivalent, so it is not implemented here.


if __name__ == "__main__":
    # Module configuration consistent with HIERSpatialEmbedding:
    #   sizes = [8, 8, 16]  -> embedding dim D = sum(sizes) = 32
    #   num_vocab = 64
    sizes = [8, 8, 16]
    num_vocab = 64
    D = sum(sizes)

    B, L = 2, 8  # batch of 2 sequences of 8 location ids

    key = jax.random.PRNGKey(0)
    k_w, k_x = jax.random.split(key)

    # Deterministic parameter init (nn.Embedding default is N(0, 1)).
    weight = jax.random.normal(k_w, (num_vocab, D), dtype=jnp.float32)
    # Integer location ids.
    x = jax.random.randint(k_x, (B, L), minval=0, maxval=num_vocab, dtype=jnp.int32)

    out = hier_spatial_embedding(x, weight)
    out = jax.block_until_ready(out)

    # Reference: plain JAX embedding lookup.
    ref = jnp.take(weight, x, axis=0)

    assert out.shape == (B, L, D), out.shape
    assert out.dtype == jnp.float32, out.dtype
    assert jnp.allclose(out, ref, atol=1e-6, rtol=1e-6), float(
        jnp.max(jnp.abs(out - ref))
    )

    print("KERNEL_OK")
</pallas_src>

<mosaic_0001>
module attributes {stable_mosaic.version = 11 : i64} {
  func.func @_embedding_kernel(%arg0: i32, %arg1: memref<4x4xi32, #tpu.memory_space<vmem>>, %arg2: memref<256x128xf32, #tpu.memory_space<vmem>>, %arg3: memref<4x128xf32, #tpu.memory_space<vmem>>) attributes {dimension_semantics = [#tpu.dimension_semantics<parallel>], iteration_bounds = array<i64: 1>, scalar_prefetch = 0 : i64, scratch_operands = 0 : i64, tpu.core_type = #tpu.core_type<tc>, window_params = [{transform_indices = @transform_0, window_bounds = array<i64: 4, 4>}, {pipeline_mode = #tpu.pipeline_mode<synchronous>, transform_indices = @transform_1, window_bounds = array<i64: 256, 128>}, {transform_indices = @transform_2, window_bounds = array<i64: 4, 128>}]} {
    %c0 = arith.constant 0 : index
    %c0_0 = arith.constant 0 : index
    %0 = vector.load %arg1[%c0, %c0_0] : memref<4x4xi32, #tpu.memory_space<vmem>>, vector<4x4xi32>
    %1 = tpu.iota {dimensions = array<i32: 1>} : vector<4x256xi32>
    %2 = vector.extract_strided_slice %0 {offsets = [0, 0], sizes = [4, 1], strides = [1, 1]} : vector<4x4xi32> to vector<4x1xi32>
    %3 = vector.broadcast %2 : vector<4x1xi32> to vector<4x256xi32>
    %4 = arith.cmpi eq, %1, %3 : vector<4x256xi32>
    %5 = vector.extract_strided_slice %0 {offsets = [0, 1], sizes = [4, 1], strides = [1, 1]} : vector<4x4xi32> to vector<4x1xi32>
    %6 = vector.broadcast %5 : vector<4x1xi32> to vector<4x256xi32>
    %7 = arith.cmpi eq, %1, %6 : vector<4x256xi32>
    %8 = arith.ori %4, %7 : vector<4x256xi1>
    %9 = vector.extract_strided_slice %0 {offsets = [0, 2], sizes = [4, 1], strides = [1, 1]} : vector<4x4xi32> to vector<4x1xi32>
    %10 = vector.broadcast %9 : vector<4x1xi32> to vector<4x256xi32>
    %11 = arith.cmpi eq, %1, %10 : vector<4x256xi32>
    %12 = arith.ori %8, %11 : vector<4x256xi1>
    %13 = vector.extract_strided_slice %0 {offsets = [0, 3], sizes = [4, 1], strides = [1, 1]} : vector<4x4xi32> to vector<4x1xi32>
    %14 = vector.broadcast %13 : vector<4x1xi32> to vector<4x256xi32>
    %15 = arith.cmpi eq, %1, %14 : vector<4x256xi32>
    %16 = arith.ori %12, %15 : vector<4x256xi1>
    %17 = arith.extui %16 : vector<4x256xi1> to vector<4x256xi32>
    %18 = arith.sitofp %17 : vector<4x256xi32> to vector<4x256xf32>
    %c0_1 = arith.constant 0 : index
    %c0_2 = arith.constant 0 : index
    %19 = vector.load %arg2[%c0_1, %c0_2] : memref<256x128xf32, #tpu.memory_space<vmem>>, vector<256x128xf32>
    %cst = arith.constant dense<0.000000e+00> : vector<4x128xf32>
    %20 = tpu.matmul %18, %19, %cst {dimension_numbers = #tpu.dot_dimension_numbers<[1], [0], [0], [1], [0, 0, 1, 1], [], []>} : vector<4x256xf32>, vector<256x128xf32>, vector<4x128xf32> -> vector<4x128xf32>
    %c0_3 = arith.constant 0 : index
    %c0_4 = arith.constant 0 : index
    %21 = vector.load %arg3[%c0_3, %c0_4] : memref<4x128xf32, #tpu.memory_space<vmem>>, vector<4x128xf32>
    tpu.vector_store %arg3[%c0_3, %c0_4], %20 {strides = array<i32>} : memref<4x128xf32, #tpu.memory_space<vmem>>, vector<4x128xf32>,
    return
  }
  func.func @transform_0(%arg0: i32) -> (i32, i32) {
    %c0_i32 = arith.constant 0 : i32
    %c0_i32_0 = arith.constant 0 : i32
    return %arg0, %c0_i32 : i32, i32
  }
  func.func @transform_1(%arg0: i32) -> (i32, i32) {
    %c0_i32 = arith.constant 0 : i32
    %c0_i32_0 = arith.constant 0 : i32
    %c0_i32_1 = arith.constant 0 : i32
    return %c0_i32, %c0_i32_0 : i32, i32
  }
  func.func @transform_2(%arg0: i32) -> (i32, i32) {
    %c0_i32 = arith.constant 0 : i32
    %c0_i32_0 = arith.constant 0 : i32
    return %arg0, %c0_i32 : i32, i32
  }
}

</mosaic_0001>

<llo_original>
// kernel: tpu_custom_call.1
$region0: #{tpu_custom_call.1}
  #allocation0 [shape = 'u32[]', space=smem, size = 0x4, offset = 0x4, fixed_abs, tag = 'smem constant byte address 0x4 - core index']
  #allocation1 [shape = 'u32[144,128]{1,0:T(1,128)}', space=vmem, size = 0x12000, scoped, tag = 'internal scratch']
  %s0 = inlined_call_operand.hbm [shape: s32[4,4], index: 0, kind: input, shape index: {}]
  %s1 = inlined_call_operand.hbm [shape: f32[256,128], index: 1, kind: input, shape index: {}]
  %s2 = inlined_call_operand.hbm [shape: f32[4,128], index: 2, kind: output, shape index: {}]
  %s3 = sld [smem:[#allocation0]]
  $region26: #{tpu_custom_call.1} parent=0
    _
  %s5 = ssub.s32 1, %s3
  %s6 = scalar_select 0, %s5, %s3
  $region1: #{tpu_custom_call.1} parent=0
    #allocation2 [shape = 'u8[2048]{0}', space=vmem, size = 0x800, scoped, tag = 'input window, operand 0, single buffered']
    #allocation3 [shape = 's32[1]{0}', space=sflag, size = 0x4, scoped, tag = 'scoped memory for tpu_custom_call.1']
    #allocation4 [shape = 's32[1]{0}', space=sflag, size = 0x4, scoped, tag = 'scoped memory for tpu_custom_call.1']
    #allocation5 [shape = 'u8[131072]{0}', space=vmem, size = 0x20000, scoped, tag = 'input window, operand 1, single buffered']
    #allocation6 [shape = 's32[1]{0}', space=sflag, size = 0x4, scoped, tag = 'scoped memory for tpu_custom_call.1']
    #allocation7 [shape = 'u8[2048]{0}', space=vmem, size = 0x800, scoped, tag = 'output window, operand 0, single buffered']
    %7 = vsyncpa [#allocation3], 0
    %8 = vsyncpa [#allocation6], 0
    %9 = vsyncpa [#allocation4], 0
    // Predicated region
    $region2: #{tpu_custom_call.1} parent=1 // pred_check
      _
    $region3: #{tpu_custom_call.1} parent=1 // pred_check_branch
      %11 = sbr.rel (0) target = $region5
    $region4: #{tpu_custom_call.1} parent=1 // pred_region
      %s13 = ssub.s32 64, 64
      %14 = vsyncadd [#allocation3], %s13
      %s16 = sshll.u32 [#allocation2], 4
      %s17 = int_to_ptr.vmem [resolvable:$true] %s16
      %19 = dma.hbm_to_vmem [thread:$0]  %s0, 64, %s17, [#allocation3]
    $region5: #{tpu_custom_call.1} parent=1 // pred_fallthru
      _
    // Predicated region
    $region6: #{tpu_custom_call.1} parent=1 // pred_check
      _
    $region7: #{tpu_custom_call.1} parent=1 // pred_check_branch
      %21 = sbr.rel (0) target = $region9
    $region8: #{tpu_custom_call.1} parent=1 // pred_region
      %s23 = ssub.s32 4096, 4096
      %24 = vsyncadd [#allocation6], %s23
      %s25 = sshll.u32 [#allocation5], 4
      %s26 = int_to_ptr.vmem [resolvable:$true] %s25
      %31 = dma.hbm_to_vmem [thread:$0]  %s1, 4096, %s26, [#allocation6], 128, 128, 8
    $region9: #{tpu_custom_call.1} parent=1 // pred_fallthru
      _
    // Predicated region
    $region10: #{tpu_custom_call.1} parent=1 // pred_check
      _
    $region11: #{tpu_custom_call.1} parent=1 // pred_check_branch
      %33 = sbr.rel (0) target = $region13
    $region12: #{tpu_custom_call.1} parent=1 // pred_region
      %34 = dma.done [#allocation3], 64
    $region13: #{tpu_custom_call.1} parent=1 // pred_fallthru
      _
    // Predicated region
    $region14: #{tpu_custom_call.1} parent=1 // pred_check
      _
    $region15: #{tpu_custom_call.1} parent=1 // pred_check_branch
      %36 = sbr.rel (0) target = $region17
    $region16: #{tpu_custom_call.1} parent=1 // pred_region
      %37 = dma.done [#allocation6], 4096
    $region17: #{tpu_custom_call.1} parent=1 // pred_fallthru
      _
    %v38 = vld [vmem:[#allocation2] sm:$0xf]
    %v39 = vlaneseq
    %v40 = vand.u32 %v39, 127
    %v41 = vadd.s32 %v40, 128
    %42 = vset.pattern.permute.xlu0 0
    %43 = vperm.xlu0 %42, %v38
    %v44 = vpop.permute.xlu0 %43
    %vm45 = vcmp.eq.s32.totalorder %v40, %v44
    %vm46 = vcmp.eq.s32.totalorder %v41, %v44
    %47 = vset.pattern.permute.xlu0 1
    %48 = vperm.xlu0 %47, %v38
    %v49 = vpop.permute.xlu0 %48
    %vm50 = vcmp.eq.s32.totalorder %v40, %v49
    %vm51 = vcmp.eq.s32.totalorder %v41, %v49
    %vm52 = vmor %vm45, %vm50
    %vm53 = vmor %vm46, %vm51
    %54 = vset.pattern.permute.xlu0 2
    %55 = vperm.xlu0 %54, %v38
    %v56 = vpop.permute.xlu0 %55
    %vm57 = vcmp.eq.s32.totalorder %v40, %v56
    %vm58 = vcmp.eq.s32.totalorder %v41, %v56
    %vm59 = vmor %vm52, %vm57
    %vm60 = vmor %vm53, %vm58
    %61 = vset.pattern.permute.xlu0 3
    %62 = vperm.xlu0 %61, %v38
    %v63 = vpop.permute.xlu0 %62
    %vm64 = vcmp.eq.s32.totalorder %v40, %v63
    %vm65 = vcmp.eq.s32.totalorder %v41, %v63
    %vm66 = vmor %vm59, %vm64
    %vm67 = vmor %vm60, %vm65
    %v68 = vsel %vm66, 1, 0
    %v69 = vsel %vm67, 1, 0
    %v70 = vcvt.s32.f32 %v68
    %v71 = vcvt.s32.f32 %v69
    %v72 = vld [vmem:[#allocation5] sm:$0xff]
    %v73 = vld [vmem:[#allocation5 + $0x8] sm:$0xff]
    %v74 = vld [vmem:[#allocation5 + $0x10] sm:$0xff]
    %v75 = vld [vmem:[#allocation5 + $0x18] sm:$0xff]
    %v76 = vld [vmem:[#allocation5 + $0x20] sm:$0xff]
    %v77 = vld [vmem:[#allocation5 + $0x28] sm:$0xff]
    %v78 = vld [vmem:[#allocation5 + $0x30] sm:$0xff]
    %v79 = vld [vmem:[#allocation5 + $0x38] sm:$0xff]
    %v80 = vld [vmem:[#allocation5 + $0x40] sm:$0xff]
    %v81 = vld [vmem:[#allocation5 + $0x48] sm:$0xff]
    %v82 = vld [vmem:[#allocation5 + $0x50] sm:$0xff]
    %v83 = vld [vmem:[#allocation5 + $0x58] sm:$0xff]
    %v84 = vld [vmem:[#allocation5 + $0x60] sm:$0xff]
    %v85 = vld [vmem:[#allocation5 + $0x68] sm:$0xff]
    %v86 = vld [vmem:[#allocation5 + $0x70] sm:$0xff]
    %v87 = vld [vmem:[#allocation5 + $0x78] sm:$0xff]
    %v88 = vld [vmem:[#allocation5 + $0x80] sm:$0xff]
    %v89 = vld [vmem:[#allocation5 + $0x88] sm:$0xff]
    %v90 = vld [vmem:[#allocation5 + $0x90] sm:$0xff]
    %v91 = vld [vmem:[#allocation5 + $0x98] sm:$0xff]
    %v92 = vld [vmem:[#allocation5 + $0xa0] sm:$0xff]
    %v93 = vld [vmem:[#allocation5 + $0xa8] sm:$0xff]
    %v94 = vld [vmem:[#allocation5 + $0xb0] sm:$0xff]
    %v95 = vld [vmem:[#allocation5 + $0xb8] sm:$0xff]
    %v96 = vld [vmem:[#allocation5 + $0xc0] sm:$0xff]
    %v97 = vld [vmem:[#allocation5 + $0xc8] sm:$0xff]
    %v98 = vld [vmem:[#allocation5 + $0xd0] sm:$0xff]
    %v99 = vld [vmem:[#allocation5 + $0xd8] sm:$0xff]
    %v100 = vld [vmem:[#allocation5 + $0xe0] sm:$0xff]
    %v101 = vld [vmem:[#allocation5 + $0xe8] sm:$0xff]
    %v102 = vld [vmem:[#allocation5 + $0xf0] sm:$0xff]
    %v103 = vld [vmem:[#allocation5 + $0xf8] sm:$0xff]
    %104 = vmatprep.subr.mxu0 0.0
    %105 = vmatpush1.msra.mxu0 %v72
    %106 = vmatprep.subr.mxu0 0.0
    %107 = vmatpush1.msra.mxu0 %v73
    %108 = vmatprep.subr.mxu0 0.0
    %109 = vmatpush1.msra.mxu0 %v74
    %110 = vmatprep.subr.mxu0 0.0
    %111 = vmatpush1.msra.mxu0 %v75
    %112 = vmatprep.subr.mxu0 0.0
    %113 = vmatpush1.msra.mxu0 %v76
    %114 = vmatprep.subr.mxu0 0.0
    %115 = vmatpush1.msra.mxu0 %v77
    %116 = vmatprep.subr.mxu0 0.0
    %117 = vmatpush1.msra.mxu0 %v78
    %118 = vmatprep.subr.mxu0 0.0
    %119 = vmatpush1.msra.mxu0 %v79
    %120 = vmatprep.subr.mxu0 0.0
    %121 = vmatpush1.msra.mxu0 %v80
    %122 = vmatprep.subr.mxu0 0.0
    %123 = vmatpush1.msra.mxu0 %v81
    %124 = vmatprep.subr.mxu0 0.0
    %125 = vmatpush1.msra.mxu0 %v82
    %126 = vmatprep.subr.mxu0 0.0
    %127 = vmatpush1.msra.mxu0 %v83
    %128 = vmatprep.subr.mxu0 0.0
    %129 = vmatpush1.msra.mxu0 %v84
    %130 = vmatprep.subr.mxu0 0.0
    %131 = vmatpush1.msra.mxu0 %v85
    %132 = vmatprep.subr.mxu0 0.0
    %133 = vmatpush1.msra.mxu0 %v86
    %134 = vmatprep.subr.mxu0 0.0
    %135 = vmatpush1.msra.mxu0 %v87
    %136 = vmatprep.subr.mxu0 0.0
    %137 = vmatpush1.msra.mxu0 %v88
    %138 = vmatprep.subr.mxu0 0.0
    %139 = vmatpush1.msra.mxu0 %v89
    %140 = vmatprep.subr.mxu0 0.0
    %141 = vmatpush1.msra.mxu0 %v90
    %142 = vmatprep.subr.mxu0 0.0
    %143 = vmatpush1.msra.mxu0 %v91
    %144 = vmatprep.subr.mxu0 0.0
    %145 = vmatpush1.msra.mxu0 %v92
    %146 = vmatprep.subr.mxu0 0.0
    %147 = vmatpush1.msra.mxu0 %v93
    %148 = vmatprep.subr.mxu0 0.0
    %149 = vmatpush1.msra.mxu0 %v94
    %150 = vmatprep.subr.mxu0 0.0
    %151 = vmatpush1.msra.mxu0 %v95
    %152 = vmatprep.subr.mxu0 0.0
    %153 = vmatpush1.msra.mxu0 %v96
    %154 = vmatprep.subr.mxu0 0.0
    %155 = vmatpush1.msra.mxu0 %v97
    %156 = vmatprep.subr.mxu0 0.0
    %157 = vmatpush1.msra.mxu0 %v98
    %158 = vmatprep.subr.mxu0 0.0
    %159 = vmatpush1.msra.mxu0 %v99
    %160 = vmatprep.subr.mxu0 0.0
    %161 = vmatpush1.msra.mxu0 %v100
    %162 = vmatprep.subr.mxu0 0.0
    %163 = vmatpush1.msra.mxu0 %v101
    %164 = vmatprep.subr.mxu0 0.0
    %165 = vmatpush1.msra.mxu0 %v102
    %166 = vmatprep.subr.mxu0 0.0
    %167 = vmatpush1.msra.mxu0 %v103
    %168 = vmatprep.mubr.f32.mxu0 %v71
    %169 = vmatmul.mubr.f32.gmra.mrb[0].mxu0 %v70
    %v170 = vpop.f32.mrb[0].mxu0
    %v171 = vadd.f32 0.0, %v170
    %v172 = vpop.f32.mrb[0].mxu0
    %173 = vdwg.mxu0
    %174 = vst [vmem:[#allocation7] sm:$0xf] %v171
    // Predicated region
    $region18: #{tpu_custom_call.1} parent=1 // pred_check
      _
    $region19: #{tpu_custom_call.1} parent=1 // pred_check_branch
      %176 = sbr.rel (0) target = $region21
    $region20: #{tpu_custom_call.1} parent=1 // pred_region
      %s178 = ssub.s32 64, 64
      %179 = vsyncadd [#allocation4], %s178
      %s181 = sshll.u32 [#allocation7], 4
      %s182 = int_to_ptr.vmem [resolvable:$true] %s181
      %184 = dma.vmem_to_hbm [thread:$0]  %s182, 64, %s2, [#allocation4]
    $region21: #{tpu_custom_call.1} parent=1 // pred_fallthru
      _
    // Predicated region
    $region22: #{tpu_custom_call.1} parent=1 // pred_check
      _
    $region23: #{tpu_custom_call.1} parent=1 // pred_check_branch
      %186 = sbr.rel (0) target = $region25
    $region24: #{tpu_custom_call.1} parent=1 // pred_region
      %187 = dma.done [#allocation4], 64
    $region25: #{tpu_custom_call.1} parent=1 // pred_fallthru
      _
    %188 = vsyncpa [#allocation3], 1
    %189 = vsyncpa [#allocation6], 1
    %190 = vsyncpa [#allocation4], 1

</llo_original>
